<compile_context>
chip_gen: v6e
topology: v6e:2x2x1
jax: 0.10.0
libtpu: 0.0.40
codegen_flags: <defaults>
</compile_context>

<pallas_src>
import functools

import jax
import jax.numpy as jnp
from jax.experimental import pallas as pl
from jax.experimental.pallas import tpu as pltpu


def _round_up(x: int, m: int) -> int:
    return ((x + m - 1) // m) * m


def _cdiv(a: int, b: int) -> int:
    return -(-a // b)


def qnet_kernel(wb_ref, xT_ref, oT_ref):
    """One batch tile of y^T = W @ x^T + b, unrolled scalar*vector FMAs on the VPU.

    wb_ref: SMEM (out_f*(in_f+1),) flat params: wb[o*(in_f+1)+k] = W[o,k],
            wb[o*(in_f+1)+in_f] = b[o]
    xT_ref: VMEM (in_f, S, 128)  -- batch refolded onto (sublane, lane) = (S, 128)
    oT_ref: VMEM (out_f, S, 128) -- lane-dense, full-vreg output slabs
    """
    in_f = xT_ref.shape[0]
    out_f = oT_ref.shape[0]
    stride = in_f + 1

    # Load each feature slab once; reuse it for every output row.
    x_slabs = [xT_ref[k] for k in range(in_f)]            # each (S, 128)

    for o in range(out_f):
        acc = x_slabs[0] * wb_ref[o * stride + 0]
        for k in range(1, in_f):
            acc = acc + x_slabs[k] * wb_ref[o * stride + k]
        # Per-row store: each output slab retires as soon as it is computed
        # (no sublane concatenate / XLU shuffle, no extra live registers).
        oT_ref[o] = (acc + wb_ref[o * stride + in_f]).astype(oT_ref.dtype)


@functools.partial(jax.jit, static_argnames=("block_b",))
def qnetwork_forward(x, w, b, *, block_b: int = 65536):
    """Pallas implementation of QNetwork.forward (single Linear layer)."""
    B, in_f = x.shape
    out_f = w.shape[0]

    # Pad the batch only to a 128-lane multiple (no pad to a tile multiple).
    b_pad = _round_up(B, 128)
    nblk = b_pad // 128

    # Sublane extent S of each batch tile (a tile covers S*128 samples).
    s_default = max(8, block_b // 128)                    # 65536 samples -> S = 512
    if nblk <= s_default:
        if nblk >= 16:
            # Whole batch would fit in one tile: split so the "parallel" grid
            # has >=2 steps and both v7x TensorCores get work.
            S = _round_up(_cdiv(nblk, 2), 8)
        else:
            S = nblk                                      # single tile (== full dim, allowed)
    else:
        S = s_default                                     # multiple of 8; ragged last block is masked
    grid = _cdiv(nblk, S)

    # Layout plumbing (cold path, XLA): batch on the lane axis, free row-major
    # reshape onto (sublane, lane) blocks.
    # TODO(synk): if the caller keeps activations feature-major and consumes
    # y^T directly (argmax / TD loss), this transpose and the final
    # slice+transpose HBM passes disappear entirely.
    xT = jnp.pad(x.astype(jnp.float32).T, ((0, 0), (0, b_pad - B)))
    xT3 = xT.reshape(in_f, nblk, 128)

    # Flat 1-D packed W|b for SMEM (~64 B, vs ~4 KiB for an [8,128]-padded 2-D ref).
    wb = jnp.concatenate(
        [w.astype(jnp.float32), b.astype(jnp.float32)[:, None]], axis=1
    ).reshape(-1)

    yT3 = pl.pallas_call(
        qnet_kernel,
        out_shape=jax.ShapeDtypeStruct((out_f, nblk, 128), jnp.float32),
        grid=(grid,),
        in_specs=[
            pl.BlockSpec(memory_space=pltpu.MemorySpace.SMEM),   # packed W|b
            pl.BlockSpec((in_f, S, 128), lambda i: (0, i, 0)),   # x^T tile
        ],
        out_specs=pl.BlockSpec((out_f, S, 128), lambda i: (0, i, 0)),
        compiler_params=pltpu.CompilerParams(
            dimension_semantics=("parallel",),                   # v7x 2-TC split
        ),
    )(wb, xT3)

    # Undo the lane-dense layout (cheap: out_f is tiny; slice drops lane padding).
    return yT3.reshape(out_f, b_pad)[:, :B].T


def init_qnetwork_params(key, input_size, output_size):
    """Deterministic init mimicking nn.Linear default (uniform +-1/sqrt(fan_in))."""
    kw, kb = jax.random.split(key)
    bound = 1.0 / jnp.sqrt(jnp.float32(input_size))
    w = jax.random.uniform(kw, (output_size, input_size), jnp.float32,
                           minval=-bound, maxval=bound)
    b = jax.random.uniform(kb, (output_size,), jnp.float32,
                           minval=-bound, maxval=bound)
    return w, b


if __name__ == "__main__":
    # CartPole-v1: observation dim = 4, action count = 2
    input_size = 4
    output_size = 2
    batch = 8

    key = jax.random.PRNGKey(0)
    kx, kp = jax.random.split(key)
    x = jax.random.normal(kx, (batch, input_size), jnp.float32)
    w, b = init_qnetwork_params(kp, input_size, output_size)

    y = qnetwork_forward(x, w, b)
    y = jax.block_until_ready(y)

    # Reference check in plain JAX.
    y_ref = x @ w.T + b
    assert y.shape == (batch, output_size)
    assert jnp.allclose(y, y_ref, atol=1e-5, rtol=1e-5)

    # Also exercise a multi-tile batch so the grid path is covered.
    xb = jax.random.normal(kx, (3000, input_size), jnp.float32)
    yb = jax.block_until_ready(qnetwork_forward(xb, w, b, block_b=2048))
    assert jnp.allclose(yb, xb @ w.T + b, atol=1e-5, rtol=1e-5)

    print("KERNEL_OK")
</pallas_src>

<mosaic_0001>
module attributes {stable_mosaic.version = 11 : i64} {
  func.func @qnet_kernel(%arg0: i32, %arg1: memref<10xf32, #tpu.memory_space<smem>>, %arg2: memref<4x1x128xf32, #tpu.memory_space<vmem>>, %arg3: memref<2x1x128xf32, #tpu.memory_space<vmem>>) attributes {dimension_semantics = [#tpu.dimension_semantics<parallel>], iteration_bounds = array<i64: 1>, scalar_prefetch = 0 : i64, scratch_operands = 0 : i64, tpu.core_type = #tpu.core_type<tc>, window_params = [{transform_indices = @transform_0, window_bounds = array<i64: 10>}, {transform_indices = @transform_1, window_bounds = array<i64: 4, 1, 128>}, {transform_indices = @transform_2, window_bounds = array<i64: 2, 1, 128>}]} {
    %c0 = arith.constant 0 : index
    %c0_0 = arith.constant 0 : index
    %c0_1 = arith.constant 0 : index
    %0 = vector.load %arg2[%c0, %c0_0, %c0_1] : memref<4x1x128xf32, #tpu.memory_space<vmem>>, vector<1x1x128xf32>
    %1 = vector.shape_cast %0 : vector<1x1x128xf32> to vector<1x128xf32>
    %c1 = arith.constant 1 : index
    %c0_2 = arith.constant 0 : index
    %c0_3 = arith.constant 0 : index
    %2 = vector.load %arg2[%c1, %c0_2, %c0_3] : memref<4x1x128xf32, #tpu.memory_space<vmem>>, vector<1x1x128xf32>
    %3 = vector.shape_cast %2 : vector<1x1x128xf32> to vector<1x128xf32>
    %c2 = arith.constant 2 : index
    %c0_4 = arith.constant 0 : index
    %c0_5 = arith.constant 0 : index
    %4 = vector.load %arg2[%c2, %c0_4, %c0_5] : memref<4x1x128xf32, #tpu.memory_space<vmem>>, vector<1x1x128xf32>
    %5 = vector.shape_cast %4 : vector<1x1x128xf32> to vector<1x128xf32>
    %c3 = arith.constant 3 : index
    %c0_6 = arith.constant 0 : index
    %c0_7 = arith.constant 0 : index
    %6 = vector.load %arg2[%c3, %c0_6, %c0_7] : memref<4x1x128xf32, #tpu.memory_space<vmem>>, vector<1x1x128xf32>
    %7 = vector.shape_cast %6 : vector<1x1x128xf32> to vector<1x128xf32>
    %c0_8 = arith.constant 0 : index
    %8 = memref.load %arg1[%c0_8] : memref<10xf32, #tpu.memory_space<smem>>
    %9 = vector.broadcast %8 : f32 to vector<1x128xf32>
    %10 = arith.mulf %1, %9 : vector<1x128xf32>
    %c1_9 = arith.constant 1 : index
    %11 = memref.load %arg1[%c1_9] : memref<10xf32, #tpu.memory_space<smem>>
    %12 = vector.broadcast %11 : f32 to vector<1x128xf32>
    %13 = arith.mulf %3, %12 : vector<1x128xf32>
    %14 = arith.addf %10, %13 : vector<1x128xf32>
    %c2_10 = arith.constant 2 : index
    %15 = memref.load %arg1[%c2_10] : memref<10xf32, #tpu.memory_space<smem>>
    %16 = vector.broadcast %15 : f32 to vector<1x128xf32>
    %17 = arith.mulf %5, %16 : vector<1x128xf32>
    %18 = arith.addf %14, %17 : vector<1x128xf32>
    %c3_11 = arith.constant 3 : index
    %19 = memref.load %arg1[%c3_11] : memref<10xf32, #tpu.memory_space<smem>>
    %20 = vector.broadcast %19 : f32 to vector<1x128xf32>
    %21 = arith.mulf %7, %20 : vector<1x128xf32>
    %22 = arith.addf %18, %21 : vector<1x128xf32>
    %c4 = arith.constant 4 : index
    %23 = memref.load %arg1[%c4] : memref<10xf32, #tpu.memory_space<smem>>
    %24 = vector.broadcast %23 : f32 to vector<1x128xf32>
    %25 = arith.addf %22, %24 : vector<1x128xf32>
    %c0_12 = arith.constant 0 : index
    %c0_13 = arith.constant 0 : index
    %c0_14 = arith.constant 0 : index
    %26 = vector.load %arg3[%c0_12, %c0_13, %c0_14] : memref<2x1x128xf32, #tpu.memory_space<vmem>>, vector<1x1x128xf32>
    %27 = vector.shape_cast %26 : vector<1x1x128xf32> to vector<1x128xf32>
    %28 = vector.shape_cast %25 : vector<1x128xf32> to vector<1x1x128xf32>
    tpu.vector_store %arg3[%c0_12, %c0_13, %c0_14], %28 {strides = array<i32>} : memref<2x1x128xf32, #tpu.memory_space<vmem>>, vector<1x1x128xf32>,
    %c5 = arith.constant 5 : index
    %29 = memref.load %arg1[%c5] : memref<10xf32, #tpu.memory_space<smem>>
    %30 = vector.broadcast %29 : f32 to vector<1x128xf32>
    %31 = arith.mulf %1, %30 : vector<1x128xf32>
    %c6 = arith.constant 6 : index
    %32 = memref.load %arg1[%c6] : memref<10xf32, #tpu.memory_space<smem>>
    %33 = vector.broadcast %32 : f32 to vector<1x128xf32>
    %34 = arith.mulf %3, %33 : vector<1x128xf32>
    %35 = arith.addf %31, %34 : vector<1x128xf32>
    %c7 = arith.constant 7 : index
    %36 = memref.load %arg1[%c7] : memref<10xf32, #tpu.memory_space<smem>>
    %37 = vector.broadcast %36 : f32 to vector<1x128xf32>
    %38 = arith.mulf %5, %37 : vector<1x128xf32>
    %39 = arith.addf %35, %38 : vector<1x128xf32>
    %c8 = arith.constant 8 : index
    %40 = memref.load %arg1[%c8] : memref<10xf32, #tpu.memory_space<smem>>
    %41 = vector.broadcast %40 : f32 to vector<1x128xf32>
    %42 = arith.mulf %7, %41 : vector<1x128xf32>
    %43 = arith.addf %39, %42 : vector<1x128xf32>
    %c9 = arith.constant 9 : index
    %44 = memref.load %arg1[%c9] : memref<10xf32, #tpu.memory_space<smem>>
    %45 = vector.broadcast %44 : f32 to vector<1x128xf32>
    %46 = arith.addf %43, %45 : vector<1x128xf32>
    %c1_15 = arith.constant 1 : index
    %c0_16 = arith.constant 0 : index
    %c0_17 = arith.constant 0 : index
    %47 = vector.load %arg3[%c1_15, %c0_16, %c0_17] : memref<2x1x128xf32, #tpu.memory_space<vmem>>, vector<1x1x128xf32>
    %48 = vector.shape_cast %47 : vector<1x1x128xf32> to vector<1x128xf32>
    %49 = vector.shape_cast %46 : vector<1x128xf32> to vector<1x1x128xf32>
    tpu.vector_store %arg3[%c1_15, %c0_16, %c0_17], %49 {strides = array<i32>} : memref<2x1x128xf32, #tpu.memory_space<vmem>>, vector<1x1x128xf32>,
    return
  }
  func.func @transform_0(%arg0: i32) -> i32 {
    %c0_i32 = arith.constant 0 : i32
    %c0_i32_0 = arith.constant 0 : i32
    return %c0_i32 : i32
  }
  func.func @transform_1(%arg0: i32) -> (i32, i32, i32) {
    %c0_i32 = arith.constant 0 : i32
    %c0_i32_0 = arith.constant 0 : i32
    %c0_i32_1 = arith.constant 0 : i32
    return %c0_i32, %arg0, %c0_i32_0 : i32, i32, i32
  }
  func.func @transform_2(%arg0: i32) -> (i32, i32, i32) {
    %c0_i32 = arith.constant 0 : i32
    %c0_i32_0 = arith.constant 0 : i32
    %c0_i32_1 = arith.constant 0 : i32
    return %c0_i32, %arg0, %c0_i32_0 : i32, i32, i32
  }
}

</mosaic_0001>

<llo_original>
// kernel: qnetwork_forward.1
$region0: #{qnetwork_forward.1}
  #allocation0 [shape = 'u32[]', space=smem, size = 0x4, offset = 0x4, fixed_abs, tag = 'smem constant byte address 0x4 - core index']
  #allocation1 [shape = 'u32[144,128]{1,0:T(1,128)}', space=vmem, size = 0x12000, scoped, tag = 'internal scratch']
  %s0 = inlined_call_operand.vmem [shape: f32[10], index: 0, kind: input, shape index: {}]
  %s1 = inlined_call_operand.vmem [shape: f32[4,1,128], index: 1, kind: input, shape index: {}]
  %s2 = inlined_call_operand.vmem [shape: f32[2,1,128], index: 2, kind: output, shape index: {}]
  %s3 = sld [smem:[#allocation0]]
  $region22: #{qnetwork_forward.1} parent=0
    _
  %s5 = ssub.s32 1, %s3
  %s6 = scalar_select 0, %s5, %s3
  $region1: #{qnetwork_forward.1} parent=0
    #allocation2 [shape = 'u8[512]{0}', space=smem, size = 0x200, scoped, tag = 'input window, operand 0, single buffered']
    #allocation3 [shape = 's32[1]{0}', space=sflag, size = 0x4, scoped, tag = 'scoped memory for qnetwork_forward.1']
    %7 = vsyncpa [#allocation3], 0
    // Predicated region
    $region2: #{qnetwork_forward.1} parent=1 // pred_check
      _
    $region3: #{qnetwork_forward.1} parent=1 // pred_check_branch
      %9 = sbr.rel (0) target = $region5
    $region4: #{qnetwork_forward.1} parent=1 // pred_region
      %s11 = ssub.s32 16, 16
      %12 = vsyncadd [#allocation3], %s11
      %s14 = sshll.u32 %s0, 4
      %s15 = int_to_ptr.vmem [resolvable:$true] %s14
      %17 = dma.vmem_to_smem %s15, 16, [#allocation2], [#allocation3]
    $region5: #{qnetwork_forward.1} parent=1 // pred_fallthru
      _
    // Predicated region
    $region6: #{qnetwork_forward.1} parent=1 // pred_check
      _
    $region7: #{qnetwork_forward.1} parent=1 // pred_check_branch
      %19 = sbr.rel (0) target = $region9
    $region8: #{qnetwork_forward.1} parent=1 // pred_region
      _
    $region9: #{qnetwork_forward.1} parent=1 // pred_fallthru
      _
    // Predicated region
    $region10: #{qnetwork_forward.1} parent=1 // pred_check
      _
    $region11: #{qnetwork_forward.1} parent=1 // pred_check_branch
      %21 = sbr.rel (0) target = $region13
    $region12: #{qnetwork_forward.1} parent=1 // pred_region
      %22 = dma.done [#allocation3], 16
    $region13: #{qnetwork_forward.1} parent=1 // pred_fallthru
      _
    %23 = sfence
    %v24 = vld [vmem:[%s1] sm:$0x1]
    %s25 = scalar_lea.vmem %s1, 1
    %v26 = vld [vmem:[%s25] sm:$0x1]
    %s27 = scalar_lea.vmem %s1, 2
    %v28 = vld [vmem:[%s27] sm:$0x1]
    %s29 = scalar_lea.vmem %s1, 3
    %v30 = vld [vmem:[%s29] sm:$0x1]
    %s31 = sld [smem:[#allocation2]]
    %v32 = vstv %s31
    %v33 = vmul.f32 %v24, %v32
    %s34 = sld [smem:[#allocation2 + $0x1]]
    %v35 = vstv %s34
    %v36 = vmul.f32 %v26, %v35
    %v37 = vadd.f32 %v33, %v36
    %s38 = sld [smem:[#allocation2 + $0x2]]
    %v39 = vstv %s38
    %v40 = vmul.f32 %v28, %v39
    %v41 = vadd.f32 %v37, %v40
    %s42 = sld [smem:[#allocation2 + $0x3]]
    %v43 = vstv %s42
    %v44 = vmul.f32 %v30, %v43
    %v45 = vadd.f32 %v41, %v44
    %s46 = sld [smem:[#allocation2 + $0x4]]
    %v47 = vstv %s46
    %v48 = vadd.f32 %v45, %v47
    %49 = vst [vmem:[%s2] sm:$0x1] %v48
    %s50 = sld [smem:[#allocation2 + $0x5]]
    %v51 = vstv %s50
    %v52 = vmul.f32 %v24, %v51
    %s53 = sld [smem:[#allocation2 + $0x6]]
    %v54 = vstv %s53
    %v55 = vmul.f32 %v26, %v54
    %v56 = vadd.f32 %v52, %v55
    %s57 = sld [smem:[#allocation2 + $0x7]]
    %v58 = vstv %s57
    %v59 = vmul.f32 %v28, %v58
    %v60 = vadd.f32 %v56, %v59
    %s61 = sld [smem:[#allocation2 + $0x8]]
    %v62 = vstv %s61
    %v63 = vmul.f32 %v30, %v62
    %v64 = vadd.f32 %v60, %v63
    %s65 = sld [smem:[#allocation2 + $0x9]]
    %v66 = vstv %s65
    %v67 = vadd.f32 %v64, %v66
    %s68 = scalar_lea.vmem %s2, 1
    %69 = vst [vmem:[%s68] sm:$0x1] %v67
    // Predicated region
    $region14: #{qnetwork_forward.1} parent=1 // pred_check
      _
    $region15: #{qnetwork_forward.1} parent=1 // pred_check_branch
      %71 = sbr.rel (0) target = $region17
    $region16: #{qnetwork_forward.1} parent=1 // pred_region
      _
    $region17: #{qnetwork_forward.1} parent=1 // pred_fallthru
      _
    // Predicated region
    $region18: #{qnetwork_forward.1} parent=1 // pred_check
      _
    $region19: #{qnetwork_forward.1} parent=1 // pred_check_branch
      %73 = sbr.rel (0) target = $region21
    $region20: #{qnetwork_forward.1} parent=1 // pred_region
      _
    $region21: #{qnetwork_forward.1} parent=1 // pred_fallthru
      _
    %74 = vsyncpa [#allocation3], 1

</llo_original>
